<compile_context>
chip_gen: v6e
topology: v6e:2x2x1
jax: 0.10.0
libtpu: 0.0.40
codegen_flags: <defaults>
</compile_context>

<pallas_src>
import numpy as np
import jax
import jax.numpy as jnp
from jax.experimental import pallas as pl
from jax.experimental.pallas import tpu as pltpu


# ---------------------------------------------------------------------------
# Config parsing (mirrors the PyTorch module __init__ / forward)
# ---------------------------------------------------------------------------
def parse_stage_config(stage_cfg):
    if isinstance(stage_cfg, int):
        return ((stage_cfg,), stage_cfg)
    elif isinstance(stage_cfg, (tuple, list)):
        return (tuple(stage_cfg), sum(stage_cfg))
    else:
        raise ValueError("Incorrect STPP config {}".format(stage_cfg))


def build_part_specs(stpp_cfg=(1, (1, 2), 1), num_seg=(2, 5, 2)):
    """List of (seg_start, seg_end, norm, scale_col) per pyramid part.

    scale_col is 0 for the starting stage, 1 for the ending stage, None otherwise,
    matching the PyTorch forward.
    """
    starting_parts, starting_mult = parse_stage_config(stpp_cfg[0])
    course_parts, course_mult = parse_stage_config(stpp_cfg[1])
    ending_parts, ending_mult = parse_stage_config(stpp_cfg[2])

    stage_parts = (starting_parts, course_parts, ending_parts)
    norm_nums = (starting_mult, course_mult, ending_mult)
    scale_cols = (0, None, 1)

    specs = []
    offset = 0
    for stage_idx in range(3):
        stage_len = num_seg[stage_idx]
        for n_part in stage_parts[stage_idx]:
            # Same tick computation as torch.arange(0, stage_len + 1e-5, stage_len / n_part)
            ticks = np.arange(0, stage_len + 1e-5, stage_len / n_part)
            for i in range(n_part):
                s = offset + int(ticks[i])
                e = offset + int(ticks[i + 1])
                specs.append((s, e, float(norm_nums[stage_idx]), scale_cols[stage_idx]))
        offset += stage_len
    return specs, sum(num_seg)


def build_leaf_decomposition(part_specs):
    """Decompose (possibly overlapping) part ranges into non-overlapping leaves.

    Each part range [s, e) is exactly the union of consecutive leaf intervals, so
    each leaf sum is computed once and reused across overlapping parts.
    """
    boundaries = sorted({b for (s, e, _, _) in part_specs for b in (s, e)})
    all_leaves = list(zip(boundaries[:-1], boundaries[1:]))
    part_leaves = []
    for (s, e, _, _) in part_specs:
        pls = tuple(lv for lv in all_leaves if lv[0] >= s and lv[1] <= e)
        assert pls and pls[0][0] == s and pls[-1][1] == e
        part_leaves.append(pls)
    used_leaves = sorted({lv for pls in part_leaves for lv in pls})
    return used_leaves, part_leaves


# ---------------------------------------------------------------------------
# Pallas kernels (static pyramid structure baked in; no learned params)
# ---------------------------------------------------------------------------
def make_stpp_kernel_flat(part_specs, used_leaves, part_leaves, feat_dim):
    """Flat layout: src (TN, n_seg*F), out (TN, P*F); requires F % 128 == 0."""
    F = feat_dim

    def kernel(src_ref, scale_ref, out_ref):
        # Non-overlapping leaf segment sums; per-segment reads straight from the
        # ref so Mosaic interleaves loads with the adds (no full-tile astype temp).
        leaf_sums = {}
        for (ls, le) in used_leaves:
            acc = src_ref[:, ls * F:(ls + 1) * F].astype(jnp.float32)
            for t in range(ls + 1, le):
                acc = acc + src_ref[:, t * F:(t + 1) * F].astype(jnp.float32)
            leaf_sums[(ls, le)] = acc

        scale = scale_ref[...].astype(jnp.float32)
        pre_cols = {}   # (col, const) -> (TN, 1) pre-folded scale column (hoisted)
        for p, ((s, e, norm, col), pls) in enumerate(zip(part_specs, part_leaves)):
            total = leaf_sums[pls[0]]
            for lv in pls[1:]:
                total = total + leaf_sums[lv]
            c = 1.0 / ((e - s) * norm)        # mean + stage norm folded into one constant
            if col is None:
                part = total * c
            else:
                key = (col, c)
                if key not in pre_cols:
                    pre_cols[key] = scale[:, col:col + 1] * c
                part = total * pre_cols[key]  # single full-tile mul per scaled part
            # Lane-dense unmasked store: p*F is a multiple of 128 on this path.
            out_ref[:, p * F:(p + 1) * F] = part.astype(out_ref.dtype)

    return kernel


def make_stpp_kernel_3d(part_specs, used_leaves, part_leaves):
    """3-D layout: src (TN, n_seg, TF), out (TN, P, TF). Used for unaligned / huge F."""

    def kernel(src_ref, scale_ref, out_ref):
        leaf_sums = {}
        for (ls, le) in used_leaves:
            acc = src_ref[:, ls, :].astype(jnp.float32)
            for t in range(ls + 1, le):
                acc = acc + src_ref[:, t, :].astype(jnp.float32)
            leaf_sums[(ls, le)] = acc

        scale = scale_ref[...].astype(jnp.float32)
        pre_cols = {}
        for p, ((s, e, norm, col), pls) in enumerate(zip(part_specs, part_leaves)):
            total = leaf_sums[pls[0]]
            for lv in pls[1:]:
                total = total + leaf_sums[lv]
            c = 1.0 / ((e - s) * norm)
            if col is None:
                part = total * c
            else:
                key = (col, c)
                if key not in pre_cols:
                    pre_cols[key] = scale[:, col:col + 1] * c
                part = total * pre_cols[key]
            out_ref[:, p, :] = part.astype(out_ref.dtype)

    return kernel


# ---------------------------------------------------------------------------
# Tile-size / VMEM helpers
# ---------------------------------------------------------------------------
def _round_up(x, m):
    return ((x + m - 1) // m) * m


def _tpu_vmem_capacity_bytes():
    """Physical VMEM per TensorCore (v5e/v6e: 128 MiB, v7x: 64 MiB)."""
    try:
        cap = getattr(pltpu.get_tpu_info(), "vmem_capacity_bytes", None)
        if cap:
            return int(cap)
    except Exception:
        pass
    return 64 * 1024 * 1024   # conservative fallback: smallest across generations


def _pick_tile_n(N, row_bytes, budget, tile_n=None):
    """Sample-tile size keeping double-buffered tiles + temporaries within budget."""
    if N < 8:
        return N                        # full-dim block (no sublane divisibility needed)
    if tile_n is not None:
        tn = max(8, (int(tile_n) // 8) * 8)
    else:
        tn = budget // max(row_bytes, 1)
        tn = max(8, min(2048, (tn // 8) * 8))
        if N >= 64:
            # Keep >= ~4 grid steps: v7x megacore sharding + DMA/compute overlap.
            tn = min(tn, _round_up(-(-N // 4), 8))
    return int(min(tn, _round_up(N, 8)))


# ---------------------------------------------------------------------------
# Wrapper
# ---------------------------------------------------------------------------
def stpp_forward(inp, scaling, stpp_cfg=(1, (1, 2), 1), num_seg=(2, 5, 2),
                 tile_n=None, tile_f=None, force_feature_tiling=False):
    """JAX/Pallas forward of StructuredTemporalPyramidPooling (sc=False).

    inp:     (num_sample * n_seg, feat_dim)
    scaling: (num_sample, 2)
    returns: (stpp_feat, stpp_feat) with stpp_feat (num_sample, P * feat_dim)
    """
    part_specs, n_seg = build_part_specs(stpp_cfg, num_seg)
    used_leaves, part_leaves = build_leaf_decomposition(part_specs)
    P = len(part_specs)
    L = len(used_leaves)

    F = inp.shape[1]
    assert inp.shape[0] % n_seg == 0
    N = inp.shape[0] // n_seg
    out_dtype = inp.dtype               # matches PyTorch dtype propagation (compute in f32)
    scaling = scaling.reshape(N, 2)

    itemsize_in = jnp.dtype(inp.dtype).itemsize
    itemsize_out = jnp.dtype(out_dtype).itemsize
    itemsize_sc = jnp.dtype(scaling.dtype).itemsize

    # Per-generation VMEM sizing (v7x: 64 MiB physical per TC; v5e/v6e: 128 MiB).
    cap = _tpu_vmem_capacity_bytes()
    budget = min(cap // 3, 48 * 1024 * 1024)    # tile budget incl. double buffering + temps
    vmem_limit = int(cap * 3 // 4)              # explicit scoped-VMEM limit (> v5e 16 MiB default)

    # Advisory cost: pure streaming op, bandwidth-bound, no transcendentals.
    leaf_adds = sum(le - ls - 1 for (ls, le) in used_leaves)
    combine_adds = sum(len(pls) - 1 for pls in part_leaves)
    cost = pl.CostEstimate(
        flops=int((leaf_adds + combine_adds + P) * N * F),
        transcendentals=0,
        bytes_accessed=int((n_seg * itemsize_in + P * itemsize_out) * N * F
                           + 2 * N * itemsize_sc),
    )

    # Flat "segments-on-lanes" path budget: double-buffered in/out tiles + f32 temps per row.
    flat_row_bytes = (2 * n_seg * F * itemsize_in
                      + 2 * P * F * itemsize_out
                      + (L + 2) * F * 4)
    use_3d = force_feature_tiling or (F % 128 != 0) or (8 * flat_row_bytes > budget)

    if not use_3d:
        # ---- Primary path: (N, n_seg*F) is a FREE view of (N*n_seg, F). ----
        src = inp.reshape(N, n_seg * F)
        TN = _pick_tile_n(N, flat_row_bytes, budget, tile_n)
        grid = (-(-N // TN),)   # partial last block handled by Pallas masking (no jnp.pad)
        kernel = make_stpp_kernel_flat(part_specs, used_leaves, part_leaves, F)
        stpp_feat = pl.pallas_call(
            kernel,
            out_shape=jax.ShapeDtypeStruct((N, P * F), out_dtype),
            grid=grid,
            in_specs=[pl.BlockSpec((TN, n_seg * F), lambda i: (i, 0)),
                      pl.BlockSpec((TN, 2), lambda i: (i, 0))],
            out_specs=pl.BlockSpec((TN, P * F), lambda i: (i, 0)),
            compiler_params=pltpu.CompilerParams(
                dimension_semantics=("parallel",),
                vmem_limit_bytes=vmem_limit),
            cost_estimate=cost,
        )(src, scaling)
    else:
        # ---- Secondary path: 3-D blocks with an optional feature-dim grid axis. ----
        src3 = inp.reshape(N, n_seg, F)
        seg_pad = _round_up(n_seg, 8)
        p_pad = _round_up(P, 8)

        def row3_bytes(tf):
            return (2 * seg_pad * tf * itemsize_in
                    + 2 * p_pad * tf * itemsize_out
                    + (L + 2) * tf * 4)

        if tile_f is not None:
            TF = int(tile_f)
        elif F <= 128 or 8 * row3_bytes(F) <= budget:
            TF = F                     # no feature tiling needed; full lane extent
        else:
            TF = 128
            for cand in (1024, 512, 256, 128):
                cand = min(cand, _round_up(F, 128))
                if 64 * row3_bytes(cand) <= budget:
                    TF = cand
                    break

        TN = _pick_tile_n(N, row3_bytes(TF), budget, tile_n)
        grid = (-(-N // TN), -(-F // TF))
        kernel = make_stpp_kernel_3d(part_specs, used_leaves, part_leaves)
        out3 = pl.pallas_call(
            kernel,
            out_shape=jax.ShapeDtypeStruct((N, P, F), out_dtype),
            grid=grid,
            in_specs=[pl.BlockSpec((TN, n_seg, TF), lambda i, j: (i, 0, j)),
                      pl.BlockSpec((TN, 2), lambda i, j: (i, 0))],
            out_specs=pl.BlockSpec((TN, P, TF), lambda i, j: (i, 0, j)),
            compiler_params=pltpu.CompilerParams(
                dimension_semantics=("parallel", "parallel"),
                vmem_limit_bytes=vmem_limit),
            cost_estimate=cost,
        )(src3, scaling)
        stpp_feat = out3.reshape(N, P * F)   # free view

    # TODO(synk): standalong_classifier=True branch (separate course_feat output) not implemented.
    return stpp_feat, stpp_feat


# ---------------------------------------------------------------------------
# Pure-JAX reference (mirrors the PyTorch code) for a correctness check
# ---------------------------------------------------------------------------
def stpp_reference(inp, scaling, stpp_cfg=(1, (1, 2), 1), num_seg=(2, 5, 2)):
    part_specs, n_seg = build_part_specs(stpp_cfg, num_seg)
    feat_dim = inp.shape[1]
    src = inp.reshape(-1, n_seg, feat_dim).astype(jnp.float32)
    scaling = scaling.reshape(-1, 2).astype(jnp.float32)
    parts = []
    for (s, e, norm, col) in part_specs:
        part = jnp.mean(src[:, s:e, :], axis=1) / norm
        if col is not None:
            part = part * scaling[:, col:col + 1]
        parts.append(part)
    return jnp.concatenate(parts, axis=1)


if __name__ == "__main__":
    key = jax.random.PRNGKey(0)
    k1, k2, k3, k4, k5, k6, k7, k8 = jax.random.split(key, 8)

    n_seg = 2 + 5 + 2          # 9

    # 1) Small single-tile test (N < 8), lane-aligned feat_dim.
    num_sample, feat_dim = 2, 128
    inp = jax.random.normal(k1, (num_sample * n_seg, feat_dim), dtype=jnp.float32)
    scl = jax.random.uniform(k2, (num_sample, 2), dtype=jnp.float32)
    out, out2 = stpp_forward(inp, scl)
    jax.block_until_ready(out)
    ref = stpp_reference(inp, scl)
    assert out.shape == (num_sample, 5 * feat_dim), out.shape
    np.testing.assert_allclose(np.asarray(out), np.asarray(ref), rtol=1e-5, atol=1e-5)
    np.testing.assert_allclose(np.asarray(out2), np.asarray(ref), rtol=1e-5, atol=1e-5)

    # 2) Multi-tile test with a partial last block (no wrapper-side padding).
    num_sample = 20
    inp = jax.random.normal(k3, (num_sample * n_seg, feat_dim), dtype=jnp.float32)
    scl = jax.random.uniform(k4, (num_sample, 2), dtype=jnp.float32)
    out, _ = stpp_forward(inp, scl, tile_n=8)
    jax.block_until_ready(out)
    np.testing.assert_allclose(np.asarray(out), np.asarray(stpp_reference(inp, scl)),
                               rtol=1e-5, atol=1e-5)

    # 3) feat_dim not a multiple of 128 -> routed to the 3-D layout path.
    num_sample, feat_dim_u = 4, 96
    inp = jax.random.normal(k5, (num_sample * n_seg, feat_dim_u), dtype=jnp.float32)
    scl = jax.random.uniform(k6, (num_sample, 2), dtype=jnp.float32)
    out, _ = stpp_forward(inp, scl)
    jax.block_until_ready(out)
    np.testing.assert_allclose(np.asarray(out), np.asarray(stpp_reference(inp, scl)),
                               rtol=1e-5, atol=1e-5)

    # 4) Feature-dim-tiled path (forced at small shapes; normally only for huge feat_dim).
    num_sample, feat_dim_f = 12, 256
    inp = jax.random.normal(k7, (num_sample * n_seg, feat_dim_f), dtype=jnp.float32)
    scl = jax.random.uniform(k8, (num_sample, 2), dtype=jnp.float32)
    out, _ = stpp_forward(inp, scl, force_feature_tiling=True, tile_n=8, tile_f=128)
    jax.block_until_ready(out)
    np.testing.assert_allclose(np.asarray(out), np.asarray(stpp_reference(inp, scl)),
                               rtol=1e-5, atol=1e-5)

    print("KERNEL_OK")
</pallas_src>

<mosaic_0001>
module attributes {stable_mosaic.version = 11 : i64} {
  func.func @kernel(%arg0: i32, %arg1: memref<2x1152xf32, #tpu.memory_space<vmem>>, %arg2: memref<2x2xf32, #tpu.memory_space<vmem>>, %arg3: memref<2x640xf32, #tpu.memory_space<vmem>>) attributes {dimension_semantics = [#tpu.dimension_semantics<parallel>], iteration_bounds = array<i64: 1>, scalar_prefetch = 0 : i64, scratch_operands = 0 : i64, tpu.core_type = #tpu.core_type<tc>, window_params = [{transform_indices = @transform_0, window_bounds = array<i64: 2, 1152>}, {transform_indices = @transform_1, window_bounds = array<i64: 2, 2>}, {transform_indices = @transform_2, window_bounds = array<i64: 2, 640>}]} {
    %c0 = arith.constant 0 : index
    %c0_0 = arith.constant 0 : index
    %0 = vector.load %arg1[%c0, %c0_0] : memref<2x1152xf32, #tpu.memory_space<vmem>>, vector<2x128xf32>
    %c0_1 = arith.constant 0 : index
    %c128 = arith.constant 128 : index
    %1 = vector.load %arg1[%c0_1, %c128] : memref<2x1152xf32, #tpu.memory_space<vmem>>, vector<2x128xf32>
    %2 = arith.addf %0, %1 : vector<2x128xf32>
    %c0_2 = arith.constant 0 : index
    %c256 = arith.constant 256 : index
    %3 = vector.load %arg1[%c0_2, %c256] : memref<2x1152xf32, #tpu.memory_space<vmem>>, vector<2x128xf32>
    %c0_3 = arith.constant 0 : index
    %c384 = arith.constant 384 : index
    %4 = vector.load %arg1[%c0_3, %c384] : memref<2x1152xf32, #tpu.memory_space<vmem>>, vector<2x128xf32>
    %5 = arith.addf %3, %4 : vector<2x128xf32>
    %c0_4 = arith.constant 0 : index
    %c512 = arith.constant 512 : index
    %6 = vector.load %arg1[%c0_4, %c512] : memref<2x1152xf32, #tpu.memory_space<vmem>>, vector<2x128xf32>
    %c0_5 = arith.constant 0 : index
    %c640 = arith.constant 640 : index
    %7 = vector.load %arg1[%c0_5, %c640] : memref<2x1152xf32, #tpu.memory_space<vmem>>, vector<2x128xf32>
    %8 = arith.addf %6, %7 : vector<2x128xf32>
    %c0_6 = arith.constant 0 : index
    %c768 = arith.constant 768 : index
    %9 = vector.load %arg1[%c0_6, %c768] : memref<2x1152xf32, #tpu.memory_space<vmem>>, vector<2x128xf32>
    %10 = arith.addf %8, %9 : vector<2x128xf32>
    %c0_7 = arith.constant 0 : index
    %c896 = arith.constant 896 : index
    %11 = vector.load %arg1[%c0_7, %c896] : memref<2x1152xf32, #tpu.memory_space<vmem>>, vector<2x128xf32>
    %c0_8 = arith.constant 0 : index
    %c1024 = arith.constant 1024 : index
    %12 = vector.load %arg1[%c0_8, %c1024] : memref<2x1152xf32, #tpu.memory_space<vmem>>, vector<2x128xf32>
    %13 = arith.addf %11, %12 : vector<2x128xf32>
    %c0_9 = arith.constant 0 : index
    %c0_10 = arith.constant 0 : index
    %14 = vector.load %arg2[%c0_9, %c0_10] : memref<2x2xf32, #tpu.memory_space<vmem>>, vector<2x2xf32>
    %15 = vector.extract_strided_slice %14 {offsets = [0, 0], sizes = [2, 1], strides = [1, 1]} : vector<2x2xf32> to vector<2x1xf32>
    %cst = arith.constant 5.000000e-01 : f32
    %16 = vector.broadcast %cst : f32 to vector<2x1xf32>
    %17 = arith.mulf %15, %16 : vector<2x1xf32>
    %18 = vector.broadcast %17 : vector<2x1xf32> to vector<2x128xf32>
    %19 = arith.mulf %2, %18 : vector<2x128xf32>
    %c0_11 = arith.constant 0 : index
    %c0_12 = arith.constant 0 : index
    %20 = vector.load %arg3[%c0_11, %c0_12] : memref<2x640xf32, #tpu.memory_space<vmem>>, vector<2x128xf32>
    tpu.vector_store %arg3[%c0_11, %c0_12], %19 {strides = array<i32>} : memref<2x640xf32, #tpu.memory_space<vmem>>, vector<2x128xf32>,
    %21 = arith.addf %5, %10 : vector<2x128xf32>
    %cst_13 = arith.constant 0.0666666701 : f32
    %22 = vector.broadcast %cst_13 : f32 to vector<2x128xf32>
    %23 = arith.mulf %21, %22 : vector<2x128xf32>
    %c0_14 = arith.constant 0 : index
    %c128_15 = arith.constant 128 : index
    %24 = vector.load %arg3[%c0_14, %c128_15] : memref<2x640xf32, #tpu.memory_space<vmem>>, vector<2x128xf32>
    tpu.vector_store %arg3[%c0_14, %c128_15], %23 {strides = array<i32>} : memref<2x640xf32, #tpu.memory_space<vmem>>, vector<2x128xf32>,
    %cst_16 = arith.constant 0.166666672 : f32
    %25 = vector.broadcast %cst_16 : f32 to vector<2x128xf32>
    %26 = arith.mulf %5, %25 : vector<2x128xf32>
    %c0_17 = arith.constant 0 : index
    %c256_18 = arith.constant 256 : index
    %27 = vector.load %arg3[%c0_17, %c256_18] : memref<2x640xf32, #tpu.memory_space<vmem>>, vector<2x128xf32>
    tpu.vector_store %arg3[%c0_17, %c256_18], %26 {strides = array<i32>} : memref<2x640xf32, #tpu.memory_space<vmem>>, vector<2x128xf32>,
    %cst_19 = arith.constant 0.111111112 : f32
    %28 = vector.broadcast %cst_19 : f32 to vector<2x128xf32>
    %29 = arith.mulf %10, %28 : vector<2x128xf32>
    %c0_20 = arith.constant 0 : index
    %c384_21 = arith.constant 384 : index
    %30 = vector.load %arg3[%c0_20, %c384_21] : memref<2x640xf32, #tpu.memory_space<vmem>>, vector<2x128xf32>
    tpu.vector_store %arg3[%c0_20, %c384_21], %29 {strides = array<i32>} : memref<2x640xf32, #tpu.memory_space<vmem>>, vector<2x128xf32>,
    %31 = vector.extract_strided_slice %14 {offsets = [0, 1], sizes = [2, 1], strides = [1, 1]} : vector<2x2xf32> to vector<2x1xf32>
    %cst_22 = arith.constant 5.000000e-01 : f32
    %32 = vector.broadcast %cst_22 : f32 to vector<2x1xf32>
    %33 = arith.mulf %31, %32 : vector<2x1xf32>
    %34 = vector.broadcast %33 : vector<2x1xf32> to vector<2x128xf32>
    %35 = arith.mulf %13, %34 : vector<2x128xf32>
    %c0_23 = arith.constant 0 : index
    %c512_24 = arith.constant 512 : index
    %36 = vector.load %arg3[%c0_23, %c512_24] : memref<2x640xf32, #tpu.memory_space<vmem>>, vector<2x128xf32>
    tpu.vector_store %arg3[%c0_23, %c512_24], %35 {strides = array<i32>} : memref<2x640xf32, #tpu.memory_space<vmem>>, vector<2x128xf32>,
    return
  }
  func.func @transform_0(%arg0: i32) -> (i32, i32) {
    %c0_i32 = arith.constant 0 : i32
    %c0_i32_0 = arith.constant 0 : i32
    return %arg0, %c0_i32 : i32, i32
  }
  func.func @transform_1(%arg0: i32) -> (i32, i32) {
    %c0_i32 = arith.constant 0 : i32
    %c0_i32_0 = arith.constant 0 : i32
    return %arg0, %c0_i32 : i32, i32
  }
  func.func @transform_2(%arg0: i32) -> (i32, i32) {
    %c0_i32 = arith.constant 0 : i32
    %c0_i32_0 = arith.constant 0 : i32
    return %arg0, %c0_i32 : i32, i32
  }
}

</mosaic_0001>

<llo_original>
// kernel: tpu_custom_call.1
$region0: #{tpu_custom_call.1}
  #allocation0 [shape = 'u32[]', space=smem, size = 0x4, offset = 0x4, fixed_abs, tag = 'smem constant byte address 0x4 - core index']
  #allocation1 [shape = 'u32[144,128]{1,0:T(1,128)}', space=vmem, size = 0x12000, scoped, tag = 'internal scratch']
  %s0 = inlined_call_operand.hbm [shape: f32[2,1152], index: 0, kind: input, shape index: {}]
  %s1 = inlined_call_operand.hbm [shape: f32[2,2], index: 1, kind: input, shape index: {}]
  %s2 = inlined_call_operand.hbm [shape: f32[2,640], index: 2, kind: output, shape index: {}]
  %s3 = sld [smem:[#allocation0]]
  $region26: #{tpu_custom_call.1} parent=0
    _
  %s5 = ssub.s32 1, %s3
  %s6 = scalar_select 0, %s5, %s3
  $region1: #{tpu_custom_call.1} parent=0
    #allocation2 [shape = 'u8[9216]{0}', space=vmem, size = 0x2400, scoped, tag = 'input window, operand 0, single buffered']
    #allocation3 [shape = 's32[1]{0}', space=sflag, size = 0x4, scoped, tag = 'scoped memory for tpu_custom_call.1']
    #allocation4 [shape = 's32[1]{0}', space=sflag, size = 0x4, scoped, tag = 'scoped memory for tpu_custom_call.1']
    #allocation5 [shape = 'u8[1024]{0}', space=vmem, size = 0x400, scoped, tag = 'input window, operand 1, single buffered']
    #allocation6 [shape = 's32[1]{0}', space=sflag, size = 0x4, scoped, tag = 'scoped memory for tpu_custom_call.1']
    #allocation7 [shape = 'u8[5120]{0}', space=vmem, size = 0x1400, scoped, tag = 'output window, operand 0, single buffered']
    %7 = vsyncpa [#allocation3], 0
    %8 = vsyncpa [#allocation6], 0
    %9 = vsyncpa [#allocation4], 0
    // Predicated region
    $region2: #{tpu_custom_call.1} parent=1 // pred_check
      _
    $region3: #{tpu_custom_call.1} parent=1 // pred_check_branch
      %11 = sbr.rel (0) target = $region5
    $region4: #{tpu_custom_call.1} parent=1 // pred_region
      %s13 = ssub.s32 288, 288
      %14 = vsyncadd [#allocation3], %s13
      %s16 = sshll.u32 [#allocation2], 4
      %s17 = int_to_ptr.vmem [resolvable:$true] %s16
      %19 = dma.hbm_to_vmem [thread:$0]  %s0, 288, %s17, [#allocation3]
    $region5: #{tpu_custom_call.1} parent=1 // pred_fallthru
      _
    // Predicated region
    $region6: #{tpu_custom_call.1} parent=1 // pred_check
      _
    $region7: #{tpu_custom_call.1} parent=1 // pred_check_branch
      %21 = sbr.rel (0) target = $region9
    $region8: #{tpu_custom_call.1} parent=1 // pred_region
      %s23 = ssub.s32 32, 32
      %24 = vsyncadd [#allocation6], %s23
      %s26 = sshll.u32 [#allocation5], 4
      %s27 = int_to_ptr.vmem [resolvable:$true] %s26
      %29 = dma.hbm_to_vmem [thread:$0]  %s1, 32, %s27, [#allocation6]
    $region9: #{tpu_custom_call.1} parent=1 // pred_fallthru
      _
    // Predicated region
    $region10: #{tpu_custom_call.1} parent=1 // pred_check
      _
    $region11: #{tpu_custom_call.1} parent=1 // pred_check_branch
      %31 = sbr.rel (0) target = $region13
    $region12: #{tpu_custom_call.1} parent=1 // pred_region
      %32 = dma.done [#allocation3], 288
    $region13: #{tpu_custom_call.1} parent=1 // pred_fallthru
      _
    // Predicated region
    $region14: #{tpu_custom_call.1} parent=1 // pred_check
      _
    $region15: #{tpu_custom_call.1} parent=1 // pred_check_branch
      %34 = sbr.rel (0) target = $region17
    $region16: #{tpu_custom_call.1} parent=1 // pred_region
      %35 = dma.done [#allocation6], 32
    $region17: #{tpu_custom_call.1} parent=1 // pred_fallthru
      _
    %v36 = vld [vmem:[#allocation2] sm:$0x3]
    %v37 = vld [vmem:[#allocation2 + $0x2] sm:$0x3]
    %v38 = vadd.f32 %v36, %v37
    %v39 = vld [vmem:[#allocation2 + $0x4] sm:$0x3]
    %v40 = vld [vmem:[#allocation2 + $0x6] sm:$0x3]
    %v41 = vadd.f32 %v39, %v40
    %v42 = vld [vmem:[#allocation2 + $0x8] sm:$0x3]
    %v43 = vld [vmem:[#allocation2 + $0xa] sm:$0x3]
    %v44 = vadd.f32 %v42, %v43
    %v45 = vld [vmem:[#allocation2 + $0xc] sm:$0x3]
    %v46 = vadd.f32 %v44, %v45
    %v47 = vld [vmem:[#allocation2 + $0xe] sm:$0x3]
    %v48 = vld [vmem:[#allocation2 + $0x10] sm:$0x3]
    %v49 = vadd.f32 %v47, %v48
    %v50 = vld [vmem:[#allocation5] sm:$0x3]
    %v51 = vmul.f32 %v50, 0.5
    %53 = vset.pattern.permute.xlu0 0
    %54 = vperm.xlu0 %53, %v51
    %v55 = vpop.permute.xlu0 %54
    %v57 = vmul.f32 %v38, %v55
    %58 = vst [vmem:[#allocation7] sm:$0x3] %v57
    %v59 = vadd.f32 %v41, %v46
    %v60 = vmul.f32 %v59, 0.06666667
    %61 = vst [vmem:[#allocation7 + $0x2] sm:$0x3] %v60
    %v62 = vmul.f32 %v41, 0.16666667
    %63 = vst [vmem:[#allocation7 + $0x4] sm:$0x3] %v62
    %v64 = vmul.f32 %v46, 0.11111111
    %65 = vst [vmem:[#allocation7 + $0x6] sm:$0x3] %v64
    %66 = vset.pattern.permute.xlu0 1
    %67 = vperm.xlu0 %66, %v51
    %v68 = vpop.permute.xlu0 %67
    %v70 = vmul.f32 %v49, %v68
    %71 = vst [vmem:[#allocation7 + $0x8] sm:$0x3] %v70
    // Predicated region
    $region18: #{tpu_custom_call.1} parent=1 // pred_check
      _
    $region19: #{tpu_custom_call.1} parent=1 // pred_check_branch
      %73 = sbr.rel (0) target = $region21
    $region20: #{tpu_custom_call.1} parent=1 // pred_region
      %s75 = ssub.s32 160, 160
      %76 = vsyncadd [#allocation4], %s75
      %s78 = sshll.u32 [#allocation7], 4
      %s79 = int_to_ptr.vmem [resolvable:$true] %s78
      %81 = dma.vmem_to_hbm [thread:$0]  %s79, 160, %s2, [#allocation4]
    $region21: #{tpu_custom_call.1} parent=1 // pred_fallthru
      _
    // Predicated region
    $region22: #{tpu_custom_call.1} parent=1 // pred_check
      _
    $region23: #{tpu_custom_call.1} parent=1 // pred_check_branch
      %83 = sbr.rel (0) target = $region25
    $region24: #{tpu_custom_call.1} parent=1 // pred_region
      %84 = dma.done [#allocation4], 160
    $region25: #{tpu_custom_call.1} parent=1 // pred_fallthru
      _
    %85 = vsyncpa [#allocation3], 1
    %86 = vsyncpa [#allocation6], 1
    %87 = vsyncpa [#allocation4], 1

</llo_original>
